<compile_context>
chip_gen: v7x
topology: tpu7x:2x2x1
jax: 0.10.0
libtpu: 0.0.40
codegen_flags: <defaults>
</compile_context>

<pallas_src>
import functools

import jax
import jax.numpy as jnp
from jax.experimental import pallas as pl
from jax.experimental.pallas import tpu as pltpu

_LANES = 128
_SUBLANES = 8
# Guard applied to each squared norm (only matters for ~zero vectors; the
# reference PyTorch module has no guard and would produce inf/nan there).
_EPS_SQ = 1e-30
# At or below this many bytes per input, use the single-invocation fast path.
_SMALL_PATH_BYTES = 1 << 20


def _round_up(x, m):
    return (x + m - 1) // m * m


def _default_block_bytes():
    """Per-input streaming block size, sized to the default scoped-VMEM limit.

    Pipeline VMEM = 2 inputs x 2 buffers x block_bytes, so:
      * v4 / v5e (16 MiB default scoped VMEM): 2 MiB blocks ->  8 MiB pipeline.
      * v6e / v7x (32 MiB default):            4 MiB blocks -> 16 MiB pipeline.
    Staying under the defaults means we never have to raise vmem_limit_bytes.
    """
    try:
        kind = jax.devices()[0].device_kind.lower()
    except Exception:
        kind = ""
    if "v5" in kind or "v4" in kind:
        return 2 << 20
    return 4 << 20


def _cosine_single_kernel(x0_ref, x1_ref, o_ref):
    """Small-N fast path: whole problem in one VMEM block, one fused reduce."""
    a = x0_ref[...].astype(jnp.float32)
    b = x1_ref[...].astype(jnp.float32)
    dot = jnp.sum(a * b, keepdims=True)          # (1, 1)
    n0 = jnp.sum(a * a, keepdims=True)
    n1 = jnp.sum(b * b, keepdims=True)
    inv = (jax.lax.rsqrt(jnp.maximum(n0, _EPS_SQ)) *
           jax.lax.rsqrt(jnp.maximum(n1, _EPS_SQ)))
    o_ref[...] = (1.0 - dot * inv).astype(o_ref.dtype)


def _cosine_stream_kernel(x0_ref, x1_ref, o_ref, dot_acc, n0_acc, n1_acc,
                          *, rows, block_rows):
    i = pl.program_id(0)
    last = pl.num_programs(0) - 1

    @pl.when(i == 0)
    def _():
        dot_acc[...] = jnp.zeros_like(dot_acc)
        n0_acc[...] = jnp.zeros_like(n0_acc)
        n1_acc[...] = jnp.zeros_like(n1_acc)

    a = x0_ref[...].astype(jnp.float32)          # (block_rows, 128)
    b = x1_ref[...].astype(jnp.float32)

    def accumulate(av, bv):
        # Fold the block into an (8, 128) vreg-shaped partial using only VPU
        # adds (splitting the leading dim into sublane groups preserves layout).
        a3 = av.reshape(block_rows // _SUBLANES, _SUBLANES, _LANES)
        b3 = bv.reshape(block_rows // _SUBLANES, _SUBLANES, _LANES)
        dot_acc[...] += jnp.sum(a3 * b3, axis=0)
        n0_acc[...] += jnp.sum(a3 * a3, axis=0)
        n1_acc[...] += jnp.sum(b3 * b3, axis=0)

    if rows % block_rows != 0:
        # Partial last block: its DMA is clamped to the array so the trailing
        # rows of the VMEM buffer are undefined -- mask them before reducing.
        @pl.when(i != last)
        def _():
            accumulate(a, b)

        @pl.when(i == last)
        def _():
            row_ids = i * block_rows + jax.lax.broadcasted_iota(
                jnp.int32, (block_rows, _LANES), 0)
            valid = row_ids < rows
            accumulate(jnp.where(valid, a, 0.0), jnp.where(valid, b, 0.0))
    else:
        accumulate(a, b)

    @pl.when(i == last)
    def _():
        # Single deferred cross-lane/sublane (XLU) reduce + EUP rsqrts.
        dot = jnp.sum(dot_acc[...], keepdims=True)   # (1, 1)
        n0 = jnp.sum(n0_acc[...], keepdims=True)
        n1 = jnp.sum(n1_acc[...], keepdims=True)
        inv = (jax.lax.rsqrt(jnp.maximum(n0, _EPS_SQ)) *
               jax.lax.rsqrt(jnp.maximum(n1, _EPS_SQ)))
        o_ref[...] = (1.0 - dot * inv).astype(o_ref.dtype)


def cosine_loss(x0, x1, *, target_block_bytes=None):
    """1 - dot(x0, x1) / (||x0|| * ||x1||) for 1-D vectors (CosineLoss.forward)."""
    assert x0.shape == x1.shape, "CosineLoss expects matching shapes"
    x0 = x0.reshape(-1)
    x1 = x1.reshape(-1)
    n = x0.shape[0]
    itemsize = jnp.dtype(x0.dtype).itemsize

    if target_block_bytes is None:
        target_block_bytes = _default_block_bytes()

    # Lane-dense (rows, 128) view.  If n is already a multiple of 128 this is a
    # pure bitcast (no copy); otherwise pad with < 128 zeros, which contribute
    # nothing to the dot product or the norms.
    rem = n % _LANES
    if rem:
        pad = _LANES - rem
        x0 = jnp.pad(x0, (0, pad))
        x1 = jnp.pad(x1, (0, pad))
    rows = x0.shape[0] // _LANES
    x0_2d = x0.reshape(rows, _LANES)
    x1_2d = x1.reshape(rows, _LANES)

    max_block_rows = max(
        _SUBLANES,
        (target_block_bytes // (_LANES * itemsize)) // _SUBLANES * _SUBLANES)

    # Small-N fast path: one invocation, no grid pipelining, no accumulators.
    if rows <= max_block_rows and rows * _LANES * itemsize <= _SMALL_PATH_BYTES:
        out = pl.pallas_call(
            _cosine_single_kernel,
            out_shape=jax.ShapeDtypeStruct((1, 1), jnp.float32),
            grid=(1,),
            in_specs=[pl.BlockSpec((rows, _LANES), lambda i: (0, 0)),
                      pl.BlockSpec((rows, _LANES), lambda i: (0, 0))],
            out_specs=pl.BlockSpec((1, 1), lambda i: (0, 0)),
        )(x0_2d, x1_2d)
        return out[0, 0]

    # Streaming path: large double-buffered blocks, partial last block masked
    # in-kernel (no block-sized padding of the inputs).
    block_rows = min(max_block_rows, _round_up(rows, _SUBLANES))
    num_steps = pl.cdiv(rows, block_rows)
    kernel = functools.partial(_cosine_stream_kernel,
                               rows=rows, block_rows=block_rows)

    out = pl.pallas_call(
        kernel,
        out_shape=jax.ShapeDtypeStruct((1, 1), jnp.float32),
        grid_spec=pltpu.PrefetchScalarGridSpec(
            num_scalar_prefetch=0,
            grid=(num_steps,),
            in_specs=[
                pl.BlockSpec((block_rows, _LANES), lambda i: (i, 0)),
                pl.BlockSpec((block_rows, _LANES), lambda i: (i, 0)),
            ],
            out_specs=pl.BlockSpec((1, 1), lambda i: (0, 0)),
            scratch_shapes=[
                pltpu.VMEM((_SUBLANES, _LANES), jnp.float32),  # partial dot
                pltpu.VMEM((_SUBLANES, _LANES), jnp.float32),  # partial ||x0||^2
                pltpu.VMEM((_SUBLANES, _LANES), jnp.float32),  # partial ||x1||^2
            ],
        ),
        compiler_params=pltpu.CompilerParams(
            dimension_semantics=("arbitrary",)),
    )(x0_2d, x1_2d)
    return out[0, 0]


def _ref_cosine_loss(x0, x1):
    x0 = x0.reshape(-1).astype(jnp.float32)
    x1 = x1.reshape(-1).astype(jnp.float32)
    return 1.0 - jnp.dot(x0, x1) / (jnp.linalg.norm(x0) * jnp.linalg.norm(x1))


if __name__ == "__main__":
    key = jax.random.PRNGKey(0)
    k0, k1, k2, k3, k4, k5 = jax.random.split(key, 6)

    # 1) Small feature vector (typical torch.dot usage) -> single-block fast path.
    N = 1024
    x0 = jax.random.normal(k0, (N,), dtype=jnp.float32)
    x1 = jax.random.normal(k1, (N,), dtype=jnp.float32)
    loss = jax.block_until_ready(cosine_loss(x0, x1))
    ref = _ref_cosine_loss(x0, x1)
    assert jnp.allclose(loss, ref, atol=1e-5, rtol=1e-5), (loss, ref)

    # 2) Non-128-multiple length + tiny blocks -> multi-step streaming path
    #    (5 evenly divided steps, no in-kernel masking).
    M = 5000
    y0 = jax.random.normal(k2, (M,), dtype=jnp.float32)
    y1 = jax.random.normal(k3, (M,), dtype=jnp.float32)
    loss2 = jax.block_until_ready(cosine_loss(y0, y1, target_block_bytes=4096))
    ref2 = _ref_cosine_loss(y0, y1)
    assert jnp.allclose(loss2, ref2, atol=1e-5, rtol=1e-5), (loss2, ref2)

    # 3) Row count not a multiple of the block -> exercises the partial
    #    last-block masking path (2 steps, last block half-valid).
    P = 1234
    z0 = jax.random.normal(k4, (P,), dtype=jnp.float32)
    z1 = jax.random.normal(k5, (P,), dtype=jnp.float32)
    loss3 = jax.block_until_ready(cosine_loss(z0, z1, target_block_bytes=4096))
    ref3 = _ref_cosine_loss(z0, z1)
    assert jnp.allclose(loss3, ref3, atol=1e-5, rtol=1e-5), (loss3, ref3)

    print("KERNEL_OK")
</pallas_src>

<mosaic_0001>
module attributes {stable_mosaic.version = 11 : i64} {
  func.func @_cosine_single_kernel(%arg0: i32, %arg1: memref<8x128xf32, #tpu.memory_space<vmem>>, %arg2: memref<8x128xf32, #tpu.memory_space<vmem>>, %arg3: memref<1x1xf32, #tpu.memory_space<vmem>>) attributes {dimension_semantics = [#tpu.dimension_semantics<arbitrary>], iteration_bounds = array<i64: 1>, scalar_prefetch = 0 : i64, scratch_operands = 0 : i64, tpu.core_type = #tpu.core_type<tc>, window_params = [{pipeline_mode = #tpu.pipeline_mode<synchronous>, transform_indices = @transform_0, window_bounds = array<i64: 8, 128>}, {pipeline_mode = #tpu.pipeline_mode<synchronous>, transform_indices = @transform_1, window_bounds = array<i64: 8, 128>}, {pipeline_mode = #tpu.pipeline_mode<synchronous>, transform_indices = @transform_2, window_bounds = array<i64: 1, 1>}]} {
    %c0 = arith.constant 0 : index
    %c0_0 = arith.constant 0 : index
    %0 = vector.load %arg1[%c0, %c0_0] : memref<8x128xf32, #tpu.memory_space<vmem>>, vector<8x128xf32>
    %c0_1 = arith.constant 0 : index
    %c0_2 = arith.constant 0 : index
    %1 = vector.load %arg2[%c0_1, %c0_2] : memref<8x128xf32, #tpu.memory_space<vmem>>, vector<8x128xf32>
    %2 = arith.mulf %0, %1 : vector<8x128xf32>
    %3 = vector.shape_cast %2 : vector<8x128xf32> to vector<1x8x128xf32>
    %cst = arith.constant dense<0.000000e+00> : vector<1xf32>
    %4 = vector.multi_reduction <add>, %3, %cst [1, 2] : vector<1x8x128xf32> to vector<1xf32>
    %5 = vector.shape_cast %4 : vector<1xf32> to vector<1x1x1xf32>
    %6 = vector.extract %5[0, 0, 0] : f32 from vector<1x1x1xf32>
    %7 = vector.broadcast %6 : f32 to vector<1x1xf32>
    %8 = arith.mulf %0, %0 : vector<8x128xf32>
    %9 = vector.shape_cast %8 : vector<8x128xf32> to vector<1x8x128xf32>
    %cst_3 = arith.constant dense<0.000000e+00> : vector<1xf32>
    %10 = vector.multi_reduction <add>, %9, %cst_3 [1, 2] : vector<1x8x128xf32> to vector<1xf32>
    %11 = vector.shape_cast %10 : vector<1xf32> to vector<1x1x1xf32>
    %12 = vector.extract %11[0, 0, 0] : f32 from vector<1x1x1xf32>
    %13 = vector.broadcast %12 : f32 to vector<1x1xf32>
    %14 = arith.mulf %1, %1 : vector<8x128xf32>
    %15 = vector.shape_cast %14 : vector<8x128xf32> to vector<1x8x128xf32>
    %cst_4 = arith.constant dense<0.000000e+00> : vector<1xf32>
    %16 = vector.multi_reduction <add>, %15, %cst_4 [1, 2] : vector<1x8x128xf32> to vector<1xf32>
    %17 = vector.shape_cast %16 : vector<1xf32> to vector<1x1x1xf32>
    %18 = vector.extract %17[0, 0, 0] : f32 from vector<1x1x1xf32>
    %19 = vector.broadcast %18 : f32 to vector<1x1xf32>
    %cst_5 = arith.constant 1.000000e-30 : f32
    %20 = vector.broadcast %cst_5 : f32 to vector<1x1xf32>
    %21 = arith.maximumf %13, %20 : vector<1x1xf32>
    %22 = math.rsqrt %21 : vector<1x1xf32>
    %cst_6 = arith.constant 1.000000e-30 : f32
    %23 = vector.broadcast %cst_6 : f32 to vector<1x1xf32>
    %24 = arith.maximumf %19, %23 : vector<1x1xf32>
    %25 = math.rsqrt %24 : vector<1x1xf32>
    %26 = arith.mulf %22, %25 : vector<1x1xf32>
    %27 = arith.mulf %7, %26 : vector<1x1xf32>
    %cst_7 = arith.constant 1.000000e+00 : f32
    %28 = vector.broadcast %cst_7 : f32 to vector<1x1xf32>
    %29 = arith.subf %28, %27 : vector<1x1xf32>
    %c0_8 = arith.constant 0 : index
    %c0_9 = arith.constant 0 : index
    %30 = vector.load %arg3[%c0_8, %c0_9] : memref<1x1xf32, #tpu.memory_space<vmem>>, vector<1x1xf32>
    tpu.vector_store %arg3[%c0_8, %c0_9], %29 {strides = array<i32>} : memref<1x1xf32, #tpu.memory_space<vmem>>, vector<1x1xf32>,
    return
  }
  func.func @transform_0(%arg0: i32) -> (i32, i32) {
    %c0_i32 = arith.constant 0 : i32
    %c0_i32_0 = arith.constant 0 : i32
    %c0_i32_1 = arith.constant 0 : i32
    return %c0_i32, %c0_i32_0 : i32, i32
  }
  func.func @transform_1(%arg0: i32) -> (i32, i32) {
    %c0_i32 = arith.constant 0 : i32
    %c0_i32_0 = arith.constant 0 : i32
    %c0_i32_1 = arith.constant 0 : i32
    return %c0_i32, %c0_i32_0 : i32, i32
  }
  func.func @transform_2(%arg0: i32) -> (i32, i32) {
    %c0_i32 = arith.constant 0 : i32
    %c0_i32_0 = arith.constant 0 : i32
    %c0_i32_1 = arith.constant 0 : i32
    return %c0_i32, %c0_i32_0 : i32, i32
  }
}

</mosaic_0001>

<llo_original>
// kernel: tpu_custom_call.1
$region0: #{tpu_custom_call.1}
  #allocation0 [shape = 'u32[]', space=smem, size = 0x4, offset = 0x4, fixed_abs, tag = 'smem constant byte address 0x4 - core index']
  #allocation1 [shape = 'u32[144,128]{1,0:T(1,128)}', space=vmem, size = 0x12000, scoped, tag = 'internal scratch']
  %s0 = inlined_call_operand.hbm [shape: f32[8,128], index: 0, kind: input, shape index: {}]
  %s1 = inlined_call_operand.hbm [shape: f32[8,128], index: 1, kind: input, shape index: {}]
  %s2 = inlined_call_operand.hbm [shape: f32[1,1], index: 2, kind: output, shape index: {}]
  %s3 = sld [smem:[#allocation0]]
  $region26: #{tpu_custom_call.1} parent=0
    _
  %s5 = ssub.s32 1, %s3
  %s6 = scalar_select 0, %s5, %s3
  $region1: #{tpu_custom_call.1} parent=0
    #allocation2 [shape = 'u8[4096]{0}', space=vmem, size = 0x1000, scoped, tag = 'input window, operand 0, single buffered']
    #allocation3 [shape = 's32[1]{0}', space=sflag, size = 0x4, scoped, tag = 'scoped memory for tpu_custom_call.1']
    #allocation4 [shape = 's32[1]{0}', space=sflag, size = 0x4, scoped, tag = 'scoped memory for tpu_custom_call.1']
    #allocation5 [shape = 'u8[4096]{0}', space=vmem, size = 0x1000, scoped, tag = 'input window, operand 1, single buffered']
    #allocation6 [shape = 's32[1]{0}', space=sflag, size = 0x4, scoped, tag = 'scoped memory for tpu_custom_call.1']
    #allocation7 [shape = 'u8[512]{0}', space=vmem, size = 0x400, scoped, tag = 'output window, operand 0, single buffered']
    %7 = vsyncpa [#allocation3], 0
    %8 = vsyncpa [#allocation6], 0
    %9 = vsyncpa [#allocation4], 0
    // Predicated region
    $region2: #{tpu_custom_call.1} parent=1 // pred_check
      _
    $region3: #{tpu_custom_call.1} parent=1 // pred_check_branch
      %11 = sbr.rel (0) target = $region5
    $region4: #{tpu_custom_call.1} parent=1 // pred_region
      %s13 = ssub.s32 128, 128
      %14 = vsyncadd [#allocation3], %s13
      %s16 = sshll.u32 [#allocation2], 4
      %s17 = int_to_ptr.vmem [resolvable:$true] %s16
      %19 = dma.hbm_to_vmem [thread:$0]  %s0, 128, %s17, [#allocation3]
    $region5: #{tpu_custom_call.1} parent=1 // pred_fallthru
      _
    // Predicated region
    $region6: #{tpu_custom_call.1} parent=1 // pred_check
      _
    $region7: #{tpu_custom_call.1} parent=1 // pred_check_branch
      %21 = sbr.rel (0) target = $region9
    $region8: #{tpu_custom_call.1} parent=1 // pred_region
      %s23 = ssub.s32 128, 128
      %24 = vsyncadd [#allocation6], %s23
      %s26 = sshll.u32 [#allocation5], 4
      %s27 = int_to_ptr.vmem [resolvable:$true] %s26
      %29 = dma.hbm_to_vmem [thread:$0]  %s1, 128, %s27, [#allocation6]
    $region9: #{tpu_custom_call.1} parent=1 // pred_fallthru
      _
    // Predicated region
    $region10: #{tpu_custom_call.1} parent=1 // pred_check
      _
    $region11: #{tpu_custom_call.1} parent=1 // pred_check_branch
      %31 = sbr.rel (0) target = $region13
    $region12: #{tpu_custom_call.1} parent=1 // pred_region
      %32 = dma.done [#allocation3], 128
    $region13: #{tpu_custom_call.1} parent=1 // pred_fallthru
      _
    // Predicated region
    $region14: #{tpu_custom_call.1} parent=1 // pred_check
      _
    $region15: #{tpu_custom_call.1} parent=1 // pred_check_branch
      %34 = sbr.rel (0) target = $region17
    $region16: #{tpu_custom_call.1} parent=1 // pred_region
      %35 = dma.done [#allocation6], 128
    $region17: #{tpu_custom_call.1} parent=1 // pred_fallthru
      _
    %v36 = vld [vmem:[#allocation2] sm:$0xff]
    %v37 = vld [vmem:[#allocation5] sm:$0xff]
    %v38 = vmul.f32 %v36, %v37
    %39 = vadd.xlane.f32.xlu0 %v38
    %v40 = vpop.xlane.xlu0 %39
    %v41 = vrot.slane %v40, 4
    %v42 = vadd.f32 %v40, %v41
    %v43 = vrot.slane %v42, 2
    %v44 = vadd.f32 %v42, %v43
    %v45 = vrot.slane %v44, 1
    %v46 = vadd.f32 %v44, %v45
    %s47 = vtos %v46
    %v48 = vstv %s47
    %v49 = vmul.f32 %v36, %v36
    %50 = vadd.xlane.f32.xlu0 %v49
    %v51 = vpop.xlane.xlu0 %50
    %v52 = vrot.slane %v51, 4
    %v53 = vadd.f32 %v51, %v52
    %v54 = vrot.slane %v53, 2
    %v55 = vadd.f32 %v53, %v54
    %v56 = vrot.slane %v55, 1
    %v57 = vadd.f32 %v55, %v56
    %s58 = vtos %v57
    %v59 = vstv %s58
    %v60 = vmul.f32 %v37, %v37
    %61 = vadd.xlane.f32.xlu0 %v60
    %v62 = vpop.xlane.xlu0 %61
    %v63 = vrot.slane %v62, 4
    %v64 = vadd.f32 %v62, %v63
    %v65 = vrot.slane %v64, 2
    %v66 = vadd.f32 %v64, %v65
    %v67 = vrot.slane %v66, 1
    %v68 = vadd.f32 %v66, %v67
    %s69 = vtos %v68
    %v70 = vstv %s69
    %v71 = vmax.f32 %v59, 1e-30
    %v72 = vrsqrt.pop %v71
    %v73 = vmax.f32 %v70, 1e-30
    %v74 = vrsqrt.pop %v73
    %v75 = vmul.f32 %v72, %v74
    %v76 = vmul.f32 %v48, %v75
    %v77 = vsub.f32 1.0, %v76
    %vm78 = vcmask 0
    %79 = vst.msk [vmem:[#allocation7] sm:$0x1] %vm78, %v77
    // Predicated region
    $region18: #{tpu_custom_call.1} parent=1 // pred_check
      _
    $region19: #{tpu_custom_call.1} parent=1 // pred_check_branch
      %81 = sbr.rel (0) target = $region21
    $region20: #{tpu_custom_call.1} parent=1 // pred_region
      %s83 = ssub.s32 16, 16
      %84 = vsyncadd [#allocation4], %s83
      %s86 = sshll.u32 [#allocation7], 4
      %s87 = int_to_ptr.vmem [resolvable:$true] %s86
      %89 = dma.vmem_to_hbm [thread:$0]  %s87, 16, %s2, [#allocation4]
    $region21: #{tpu_custom_call.1} parent=1 // pred_fallthru
      _
    // Predicated region
    $region22: #{tpu_custom_call.1} parent=1 // pred_check
      _
    $region23: #{tpu_custom_call.1} parent=1 // pred_check_branch
      %91 = sbr.rel (0) target = $region25
    $region24: #{tpu_custom_call.1} parent=1 // pred_region
      %92 = dma.done [#allocation4], 16
    $region25: #{tpu_custom_call.1} parent=1 // pred_fallthru
      _
    %93 = vsyncpa [#allocation3], 1
    %94 = vsyncpa [#allocation6], 1
    %95 = vsyncpa [#allocation4], 1

</llo_original>
